<compile_context>
chip_gen: v6e
topology: v6e:2x2x1
jax: 0.10.0
libtpu: 0.0.40
codegen_flags: <defaults>
</compile_context>

<pallas_src>
import jax
import jax.numpy as jnp
from jax.experimental import pallas as pl
from jax.experimental.pallas import tpu as pltpu


def _spe_kernel(x_ref, pe_ref, out_ref):
    # x_ref / out_ref: (tB, tL) slab of the flattened input / output.
    # pe_ref:          (1, tL) slab of the already-noisy positional table,
    #                  broadcast across the tB batch rows by jnp.
    out_ref[...] = x_ref[...] + pe_ref[...]


def _largest_aligned_divisor(n, unit, cap):
    """Largest multiple of `unit` that divides `n` and is <= cap (0 if none)."""
    best = 0
    t = unit
    limit = min(n, cap)
    while t <= limit:
        if n % t == 0:
            best = t
        t += unit
    return best


def _largest_divisor(n, cap):
    """Largest divisor of `n` that is <= cap (always >= 1)."""
    d = int(min(n, cap))
    while d > 1 and n % d:
        d -= 1
    return max(d, 1)


def _chip_pipeline_budget_bytes():
    """Chip-aware whole-pipeline VMEM budget (conservative on unknown parts)."""
    try:
        kind = jax.devices()[0].device_kind.lower()
    except Exception:
        kind = ""
    if any(tag in kind for tag in ("v6", "v7", "7x")):
        return 24 << 20  # 32 MiB scoped-VMEM default on v6e / v7x
    return 12 << 20      # 16 MiB scoped-VMEM default on v5e / unknown


def _pick_tiles(B, Lp, itemsize, *, pipeline_budget_bytes):
    """Pick (tB, tL) such that the whole double-buffered pipeline
    (2x x-block + 2x out-block + 2x sublane-padded pe-block) fits inside
    pipeline_budget_bytes.  tB is a full sublane multiple (or == B); tL is a
    multiple of 128 dividing Lp (Lp is pre-padded to a multiple of 128)."""
    sub = max(8, 32 // itemsize)          # f32: 8, bf16: 16, int8/fp8: 32

    # ---- batch tile first (never degenerate to 1-sublane blocks) ----------
    # Per lane, a (tB, tL) pipeline costs (4*tB + 16)*itemsize bytes:
    #   2x x + 2x out = 4*tB rows, plus the pe block padded to 8 sublanes,
    #   double-buffered = 16 rows.  Cap tB so at least min(Lp, 512) lanes fit.
    min_lanes = min(Lp, 512)
    tb_cap = (pipeline_budget_bytes // (min_lanes * itemsize) - 16) // 4
    tb_cap = max(sub, tb_cap)
    if B <= tb_cap:
        tB = B
    else:
        tB = (_largest_aligned_divisor(B, sub, tb_cap)   # sublane-aligned divisor
              or _largest_divisor(B, tb_cap))            # any divisor (rare fallback)

    # ---- lane tile from the remaining budget -------------------------------
    lane_budget = pipeline_budget_bytes // ((4 * tB + 16) * itemsize)
    lane_budget = max(128, lane_budget)
    if Lp <= lane_budget:
        tL = Lp
    else:
        # Lp is a multiple of 128 and lane_budget >= 128, so this never fails.
        tL = _largest_aligned_divisor(Lp, 128, lane_budget) or 128
    return tB, tL


def stochastic_positional_encoding(x, pe, noise_key, *, std=0.02):
    """x: (B, S, D); pe: (max_len, D) parameter; noise_key: jax PRNG key."""
    B, S, D = x.shape
    assert pe.shape[0] >= S and pe.shape[1] == D

    # Hoisted batch-invariant part (O(S*D), done once): noise = randn * std,
    # folded into the positional table.  Pre-slicing pe to S rows also avoids
    # any (sublane, lane) divisibility constraints on a pe sub-block.
    noise = jax.random.normal(noise_key, (S, D), dtype=jnp.float32) * std
    pe_noisy = (pe[:S].astype(jnp.float32) + noise).astype(x.dtype)

    # Lane-dense flattening (free reshapes on contiguous arrays).
    L = S * D
    x2 = x.reshape(B, L)
    pe2 = pe_noisy.reshape(1, L)

    # Keep the last block dim a multiple of 128 (unmasked vst); pad if needed.
    Lp = ((L + 127) // 128) * 128
    if Lp != L:
        x2 = jnp.pad(x2, ((0, 0), (0, Lp - L)))
        pe2 = jnp.pad(pe2, ((0, 0), (0, Lp - L)))

    itemsize = x2.dtype.itemsize
    budget = _chip_pipeline_budget_bytes()
    tB, tL = _pick_tiles(B, Lp, itemsize, pipeline_budget_bytes=budget)

    g_lane, g_batch = Lp // tL, B // tB
    if g_lane >= g_batch:
        # Lane chunks outer: the (1, tL) pe block keeps a constant block index
        # across the inner batch sweep -> never re-fetched.  Larger axis is
        # leading, so v7x megacore still shards it across both TensorCores.
        grid = (g_lane, g_batch)
        x_map = lambda l, b: (b, l)
        pe_map = lambda l, b: (0, l)
    else:
        # Batch chunks outer (larger extent first for megacore sharding);
        # pe re-fetch per step is only 1/tB of the x traffic.
        grid = (g_batch, g_lane)
        x_map = lambda b, l: (b, l)
        pe_map = lambda b, l: (0, l)

    # Honest VMEM accounting: double-buffered x + out, plus the pe block
    # sublane-padded to 8 rows in VMEM (also double-buffered).
    footprint = (4 * tB + 16) * tL * itemsize
    vmem_limit = int(min(32 << 20, max(footprint + (4 << 20), 16 << 20)))

    out2 = pl.pallas_call(
        _spe_kernel,
        out_shape=jax.ShapeDtypeStruct((B, Lp), x.dtype),
        grid=grid,
        in_specs=[
            pl.BlockSpec((tB, tL), x_map),   # x
            pl.BlockSpec((1, tL), pe_map),   # pe_noisy (batch-broadcast)
        ],
        out_specs=pl.BlockSpec((tB, tL), x_map),
        compiler_params=pltpu.CompilerParams(
            dimension_semantics=("parallel", "parallel"),
            vmem_limit_bytes=vmem_limit,
        ),
    )(x2, pe2)

    if Lp != L:
        out2 = out2[:, :L]
    return out2.reshape(B, S, D)


if __name__ == "__main__":
    B, S, D = 2, 8, 32
    MAX_LEN, STD = 256, 0.02

    key = jax.random.PRNGKey(0)
    kx, kpe, knoise = jax.random.split(key, 3)

    # Deterministic synthetic inputs / parameters (pe ~ randn * std, as in __init__).
    x = jax.random.normal(kx, (B, S, D), dtype=jnp.float32)
    pe = jax.random.normal(kpe, (MAX_LEN, D), dtype=jnp.float32) * STD

    out = stochastic_positional_encoding(x, pe, knoise, std=STD)
    jax.block_until_ready(out)

    # Shape preserved; (pe + noise) offset identical for every batch element
    # (broadcast semantics of the torch module).
    assert out.shape == x.shape
    off0 = out[0] - x[0]
    off1 = out[1] - x[1]
    assert jnp.allclose(off0, off1, atol=1e-6)
    # Offset should be close to pe[:S] (noise has std=0.02).
    assert jnp.max(jnp.abs(off0 - pe[:S])) < 0.5
    # Exact match against a pure-JAX reference using the same noise draw.
    noise = jax.random.normal(knoise, (S, D), dtype=jnp.float32) * STD
    ref = x + (pe[:S] + noise)[None, :, :]
    assert jnp.allclose(out, ref, atol=1e-5)

    print("KERNEL_OK")
</pallas_src>

<mosaic_0001>
module attributes {stable_mosaic.version = 11 : i64} {
  func.func @_spe_kernel(%arg0: i32, %arg1: i32, %arg2: memref<2x256xf32, #tpu.memory_space<vmem>>, %arg3: memref<1x256xf32, #tpu.memory_space<vmem>>, %arg4: memref<2x256xf32, #tpu.memory_space<vmem>>) attributes {dimension_semantics = [#tpu.dimension_semantics<parallel>, #tpu.dimension_semantics<parallel>], iteration_bounds = array<i64: 1, 1>, scalar_prefetch = 0 : i64, scratch_operands = 0 : i64, tpu.core_type = #tpu.core_type<tc>, window_params = [{transform_indices = @transform_0, window_bounds = array<i64: 2, 256>}, {transform_indices = @transform_1, window_bounds = array<i64: 1, 256>}, {transform_indices = @transform_2, window_bounds = array<i64: 2, 256>}]} {
    %c0 = arith.constant 0 : index
    %c0_0 = arith.constant 0 : index
    %0 = vector.load %arg2[%c0, %c0_0] : memref<2x256xf32, #tpu.memory_space<vmem>>, vector<2x256xf32>
    %c0_1 = arith.constant 0 : index
    %c0_2 = arith.constant 0 : index
    %1 = vector.load %arg3[%c0_1, %c0_2] : memref<1x256xf32, #tpu.memory_space<vmem>>, vector<1x256xf32>
    %2 = vector.broadcast %1 : vector<1x256xf32> to vector<2x256xf32>
    %3 = arith.addf %0, %2 : vector<2x256xf32>
    %c0_3 = arith.constant 0 : index
    %c0_4 = arith.constant 0 : index
    %4 = vector.load %arg4[%c0_3, %c0_4] : memref<2x256xf32, #tpu.memory_space<vmem>>, vector<2x256xf32>
    tpu.vector_store %arg4[%c0_3, %c0_4], %3 {strides = array<i32>} : memref<2x256xf32, #tpu.memory_space<vmem>>, vector<2x256xf32>,
    return
  }
  func.func @transform_0(%arg0: i32, %arg1: i32) -> (i32, i32) {
    %c0_i32 = arith.constant 0 : i32
    return %arg1, %arg0 : i32, i32
  }
  func.func @transform_1(%arg0: i32, %arg1: i32) -> (i32, i32) {
    %c0_i32 = arith.constant 0 : i32
    %c0_i32_0 = arith.constant 0 : i32
    return %c0_i32, %arg0 : i32, i32
  }
  func.func @transform_2(%arg0: i32, %arg1: i32) -> (i32, i32) {
    %c0_i32 = arith.constant 0 : i32
    return %arg1, %arg0 : i32, i32
  }
}

</mosaic_0001>

<llo_original>
// kernel: tpu_custom_call.1
$region0: #{tpu_custom_call.1}
  #allocation0 [shape = 'u32[]', space=smem, size = 0x4, offset = 0x4, fixed_abs, tag = 'smem constant byte address 0x4 - core index']
  #allocation1 [shape = 'u32[144,128]{1,0:T(1,128)}', space=vmem, size = 0x12000, scoped, tag = 'internal scratch']
  %s0 = inlined_call_operand.hbm [shape: f32[2,256], index: 0, kind: input, shape index: {}]
  %s1 = inlined_call_operand.hbm [shape: f32[1,256], index: 1, kind: input, shape index: {}]
  %s2 = inlined_call_operand.hbm [shape: f32[2,256], index: 2, kind: output, shape index: {}]
  %s3 = sld [smem:[#allocation0]]
  $region26: #{tpu_custom_call.1} parent=0
    _
  %s5 = ssub.s32 1, %s3
  %s6 = scalar_select 0, %s5, %s3
  $region1: #{tpu_custom_call.1} parent=0
    #allocation2 [shape = 'u8[2048]{0}', space=vmem, size = 0x800, scoped, tag = 'input window, operand 0, single buffered']
    #allocation3 [shape = 's32[1]{0}', space=sflag, size = 0x4, scoped, tag = 'scoped memory for tpu_custom_call.1']
    #allocation4 [shape = 's32[1]{0}', space=sflag, size = 0x4, scoped, tag = 'scoped memory for tpu_custom_call.1']
    #allocation5 [shape = 'u8[1024]{0}', space=vmem, size = 0x400, scoped, tag = 'input window, operand 1, single buffered']
    #allocation6 [shape = 's32[1]{0}', space=sflag, size = 0x4, scoped, tag = 'scoped memory for tpu_custom_call.1']
    #allocation7 [shape = 'u8[2048]{0}', space=vmem, size = 0x800, scoped, tag = 'output window, operand 0, single buffered']
    %7 = vsyncpa [#allocation3], 0
    %8 = vsyncpa [#allocation6], 0
    %9 = vsyncpa [#allocation4], 0
    // Predicated region
    $region2: #{tpu_custom_call.1} parent=1 // pred_check
      _
    $region3: #{tpu_custom_call.1} parent=1 // pred_check_branch
      %11 = sbr.rel (0) target = $region5
    $region4: #{tpu_custom_call.1} parent=1 // pred_region
      %s13 = ssub.s32 64, 64
      %14 = vsyncadd [#allocation3], %s13
      %s16 = sshll.u32 [#allocation2], 4
      %s17 = int_to_ptr.vmem [resolvable:$true] %s16
      %19 = dma.hbm_to_vmem [thread:$0]  %s0, 64, %s17, [#allocation3]
    $region5: #{tpu_custom_call.1} parent=1 // pred_fallthru
      _
    // Predicated region
    $region6: #{tpu_custom_call.1} parent=1 // pred_check
      _
    $region7: #{tpu_custom_call.1} parent=1 // pred_check_branch
      %21 = sbr.rel (0) target = $region9
    $region8: #{tpu_custom_call.1} parent=1 // pred_region
      %s23 = ssub.s32 32, 32
      %24 = vsyncadd [#allocation6], %s23
      %s26 = sshll.u32 [#allocation5], 4
      %s27 = int_to_ptr.vmem [resolvable:$true] %s26
      %29 = dma.hbm_to_vmem [thread:$0]  %s1, 32, %s27, [#allocation6]
    $region9: #{tpu_custom_call.1} parent=1 // pred_fallthru
      _
    // Predicated region
    $region10: #{tpu_custom_call.1} parent=1 // pred_check
      _
    $region11: #{tpu_custom_call.1} parent=1 // pred_check_branch
      %31 = sbr.rel (0) target = $region13
    $region12: #{tpu_custom_call.1} parent=1 // pred_region
      %32 = dma.done [#allocation3], 64
    $region13: #{tpu_custom_call.1} parent=1 // pred_fallthru
      _
    // Predicated region
    $region14: #{tpu_custom_call.1} parent=1 // pred_check
      _
    $region15: #{tpu_custom_call.1} parent=1 // pred_check_branch
      %34 = sbr.rel (0) target = $region17
    $region16: #{tpu_custom_call.1} parent=1 // pred_region
      %35 = dma.done [#allocation6], 32
    $region17: #{tpu_custom_call.1} parent=1 // pred_fallthru
      _
    %v36 = vld [vmem:[#allocation2] sm:$0xf]
    %v37 = vld [vmem:[#allocation5] sm:$0x3]
    %v39 = vlaneseq
    %v40 = vshrl.u32 %v39, 7
    %v41 = vsub.s32 0, %v40
    %v42 = vrot.slane %v37, %v41
    %v43 = vlaneseq
    %v44 = vshrl.u32 %v43, 7
    %v45 = vsub.s32 1, %v44
    %v46 = vrot.slane %v37, %v45
    %v47 = vcombine.low %v42, %v46
    %v49 = vunpack.c.l.s4 1983009808
    %v50 = vunpack.c.0.s8 %v49
    %v51 = vlaneseq
    %v52 = vshrl.u32 %v51, 7
    %v53 = vsub.s32 %v50, %v52
    %v54 = vrot.slane %v47, %v53
    %v56 = vadd.f32 %v36, %v54
    %57 = vst [vmem:[#allocation7] sm:$0xf] %v56
    // Predicated region
    $region18: #{tpu_custom_call.1} parent=1 // pred_check
      _
    $region19: #{tpu_custom_call.1} parent=1 // pred_check_branch
      %59 = sbr.rel (0) target = $region21
    $region20: #{tpu_custom_call.1} parent=1 // pred_region
      %s61 = ssub.s32 64, 64
      %62 = vsyncadd [#allocation4], %s61
      %s64 = sshll.u32 [#allocation7], 4
      %s65 = int_to_ptr.vmem [resolvable:$true] %s64
      %67 = dma.vmem_to_hbm [thread:$0]  %s65, 64, %s2, [#allocation4]
    $region21: #{tpu_custom_call.1} parent=1 // pred_fallthru
      _
    // Predicated region
    $region22: #{tpu_custom_call.1} parent=1 // pred_check
      _
    $region23: #{tpu_custom_call.1} parent=1 // pred_check_branch
      %69 = sbr.rel (0) target = $region25
    $region24: #{tpu_custom_call.1} parent=1 // pred_region
      %70 = dma.done [#allocation4], 64
    $region25: #{tpu_custom_call.1} parent=1 // pred_fallthru
      _
    %71 = vsyncpa [#allocation3], 1
    %72 = vsyncpa [#allocation6], 1
    %73 = vsyncpa [#allocation4], 1

</llo_original>
